<compile_context>
chip_gen: v6e
topology: v6e:2x2x1
jax: 0.10.0
libtpu: 0.0.40
codegen_flags: <defaults>
</compile_context>

<pallas_src>
import math
import jax
import jax.numpy as jnp
from jax.experimental import pallas as pl
from jax.experimental.pallas import tpu as pltpu


def vae_kernel(x_ref, eps_ref,
               w1_ref, b1_ref, w2_ref, b2_ref,
               wh_ref, bh_ref, wd_ref, bd_ref,
               head_ref, dec_ref):
    """One batch tile of the VAE forward.

    x_ref   : (bt, n)    input tile
    eps_ref : (bt, m)    pre-sampled N(0,1) noise tile (training-mode reparameterization)
    w*_ref  : pre-transposed weights, (in_features, out_features)
    wh_ref  : (n, 2m)    fused [fc_mu | fc_logvar]
    wd_ref  : (m, 2n)    fused, pre-masked [dec_mean | fc_logcov]
    head_ref: (bt, 2m)   output slab  mu || logvar
    dec_ref : (bt, 2n)   output slab  x_recon || logcov
    """
    m = eps_ref.shape[-1]
    x = x_ref[...]

    # ---- Encoder: enc1 -> relu -> enc2 -> relu ----
    h1 = jnp.dot(x, w1_ref[...], preferred_element_type=jnp.float32) + b1_ref[...]
    h1 = jnp.maximum(h1, 0.0)
    h2 = jnp.dot(h1, w2_ref[...], preferred_element_type=jnp.float32) + b2_ref[...]
    h2 = jnp.maximum(h2, 0.0)

    # ---- Fused mu / logvar heads: one (bt, 2m) matmul ----
    heads = jnp.dot(h2, wh_ref[...], preferred_element_type=jnp.float32) + bh_ref[...]
    mu = heads[:, :m]
    logvar = heads[:, m:]

    # ---- latent_sample (training mode): z = eps * exp(0.5*logvar) + mu ----
    z = eps_ref[...] * jnp.exp(0.5 * logvar) + mu

    # ---- Fused decoder (pre-masked SparseLinear x2): one (bt, 2n) matmul ----
    dec_ref[...] = jnp.dot(z, wd_ref[...], preferred_element_type=jnp.float32) + bd_ref[...]
    head_ref[...] = heads


def _kaiming_uniform_linear(key, out_features, in_features):
    """Deterministic init matching nn.Linear / SparseLinear reset_parameters()."""
    kw, kb = jax.random.split(key)
    # kaiming_uniform_(a=sqrt(5)) => bound = 1/sqrt(fan_in); bias bound = 1/sqrt(fan_in)
    bound = 1.0 / math.sqrt(in_features)
    w = jax.random.uniform(kw, (out_features, in_features), jnp.float32,
                           minval=-bound, maxval=bound)
    b = jax.random.uniform(kb, (1, out_features), jnp.float32,
                           minval=-bound, maxval=bound)
    return w, b


def init_vae_params(key, m, n):
    """Parameters in the original PyTorch (out_features, in_features) convention."""
    keys = jax.random.split(key, 7)
    w1, b1 = _kaiming_uniform_linear(keys[0], n, n)      # enc1: n -> n
    w2, b2 = _kaiming_uniform_linear(keys[1], n, n)      # enc2: n -> n
    wmu, bmu = _kaiming_uniform_linear(keys[2], m, n)    # fc_mu: n -> m
    wlv, blv = _kaiming_uniform_linear(keys[3], m, n)    # fc_logvar: n -> m
    wdm, bdm = _kaiming_uniform_linear(keys[4], n, m)    # dec_mean: m -> n (sparse)
    wdc, bdc = _kaiming_uniform_linear(keys[5], n, m)    # fc_logcov: m -> n (sparse)
    mask = (jax.random.uniform(keys[6], (n, m), jnp.float32) > 0.5).astype(jnp.float32)
    return dict(w1=w1, b1=b1, w2=w2, b2=b2, wmu=wmu, bmu=bmu, wlv=wlv, blv=blv,
                wdm=wdm, bdm=bdm, wdc=wdc, bdc=bdc, mask=mask)


def prepare_kernel_params(params):
    """Layout plumbing done once outside the kernel: transpose, mask, fuse."""
    w1t = params["w1"].T                                   # (n, n)
    w2t = params["w2"].T                                   # (n, n)
    # Fused heads: (2m, n) -> transpose -> (n, 2m); biases -> (1, 2m)
    wh = jnp.concatenate([params["wmu"], params["wlv"]], axis=0).T
    bh = jnp.concatenate([params["bmu"], params["blv"]], axis=1)
    # Fused, pre-masked decoder: (2n, m) -> transpose -> (m, 2n); biases -> (1, 2n)
    wdm_m = params["wdm"] * params["mask"]
    wdc_m = params["wdc"] * params["mask"]
    wd = jnp.concatenate([wdm_m, wdc_m], axis=0).T
    bd = jnp.concatenate([params["bdm"], params["bdc"]], axis=1)
    return dict(w1t=w1t, b1=params["b1"], w2t=w2t, b2=params["b2"],
                wh=wh, bh=bh, wd=wd, bd=bd)


def _round_up(v, mult):
    return ((v + mult - 1) // mult) * mult


def vae_forward(x, eps, params):
    """Runs the full VAE forward in one pallas_call with a batch grid."""
    B, n = x.shape
    m = eps.shape[1]
    kp = prepare_kernel_params(params)

    # Batch tiling: sublane-align to 8 rows, use up to 256-row tiles (weights are
    # tiny, so the VMEM footprint is dominated by the x/eps/output tiles and stays
    # far below the scoped limit even at 256 rows).
    Bp = _round_up(B, 8)
    bt = min(Bp, 256)
    Bp = _round_up(Bp, bt)
    n_tiles = Bp // bt
    if Bp != B:
        x = jnp.pad(x, ((0, Bp - B), (0, 0)))
        eps = jnp.pad(eps, ((0, Bp - B), (0, 0)))

    def batch_spec(cols):
        return pl.BlockSpec((bt, cols), lambda i: (i, 0))

    def const_spec(arr):
        # Constant block index -> DMA'd once, stays resident across grid steps.
        return pl.BlockSpec(arr.shape, lambda i: (0, 0))

    in_specs = [
        batch_spec(n),            # x
        batch_spec(m),            # eps
        const_spec(kp["w1t"]), const_spec(kp["b1"]),
        const_spec(kp["w2t"]), const_spec(kp["b2"]),
        const_spec(kp["wh"]),  const_spec(kp["bh"]),
        const_spec(kp["wd"]),  const_spec(kp["bd"]),
    ]
    out_specs = (batch_spec(2 * m), batch_spec(2 * n))
    out_shapes = (
        jax.ShapeDtypeStruct((Bp, 2 * m), jnp.float32),   # mu || logvar
        jax.ShapeDtypeStruct((Bp, 2 * n), jnp.float32),   # x_recon || logcov
    )

    head, dec = pl.pallas_call(
        vae_kernel,
        out_shape=out_shapes,
        grid=(n_tiles,),
        in_specs=in_specs,
        out_specs=out_specs,
        compiler_params=pltpu.CompilerParams(
            dimension_semantics=("parallel",)),
    )(x, eps,
      kp["w1t"], kp["b1"], kp["w2t"], kp["b2"],
      kp["wh"], kp["bh"], kp["wd"], kp["bd"])

    mu = head[:B, :m]
    logvar = head[:B, m:]
    x_recon = dec[:B, :n]
    logcov = dec[:B, n:]
    return x_recon, logcov, mu, logvar


if __name__ == "__main__":
    # Small shapes consistent with the module: n = observed dim, m = latent dim.
    B, n, m = 8, 32, 8

    root = jax.random.PRNGKey(0)
    k_params, k_x, k_eps = jax.random.split(root, 3)

    params = init_vae_params(k_params, m, n)
    x = jax.random.normal(k_x, (B, n), jnp.float32)
    # Training-mode reparameterization noise, sampled deterministically outside the
    # kernel (matches torch.empty_like(std).normal_() in eval-free training mode).
    eps = jax.random.normal(k_eps, (B, m), jnp.float32)

    x_recon, logcov, mu, logvar = jax.block_until_ready(vae_forward(x, eps, params))

    # Pure-JAX reference of the original (un-fused, un-transposed) math.
    h1 = jnp.maximum(x @ params["w1"].T + params["b1"], 0.0)
    h2 = jnp.maximum(h1 @ params["w2"].T + params["b2"], 0.0)
    mu_ref = h2 @ params["wmu"].T + params["bmu"]
    lv_ref = h2 @ params["wlv"].T + params["blv"]
    z_ref = eps * jnp.exp(0.5 * lv_ref) + mu_ref
    xr_ref = z_ref @ (params["wdm"] * params["mask"]).T + params["bdm"]
    lc_ref = z_ref @ (params["wdc"] * params["mask"]).T + params["bdc"]

    assert jnp.allclose(x_recon, xr_ref, atol=1e-5), "x_recon mismatch"
    assert jnp.allclose(logcov, lc_ref, atol=1e-5), "logcov mismatch"
    assert jnp.allclose(mu, mu_ref, atol=1e-5), "mu mismatch"
    assert jnp.allclose(logvar, lv_ref, atol=1e-5), "logvar mismatch"

    print("KERNEL_OK")
</pallas_src>

<mosaic_0001>
module attributes {stable_mosaic.version = 11 : i64} {
  func.func @vae_kernel(%arg0: i32, %arg1: memref<8x32xf32, #tpu.memory_space<vmem>>, %arg2: memref<8x8xf32, #tpu.memory_space<vmem>>, %arg3: memref<32x32xf32, #tpu.memory_space<vmem>>, %arg4: memref<1x32xf32, #tpu.memory_space<vmem>>, %arg5: memref<32x32xf32, #tpu.memory_space<vmem>>, %arg6: memref<1x32xf32, #tpu.memory_space<vmem>>, %arg7: memref<32x16xf32, #tpu.memory_space<vmem>>, %arg8: memref<1x16xf32, #tpu.memory_space<vmem>>, %arg9: memref<8x64xf32, #tpu.memory_space<vmem>>, %arg10: memref<1x64xf32, #tpu.memory_space<vmem>>, %arg11: memref<8x16xf32, #tpu.memory_space<vmem>>, %arg12: memref<8x64xf32, #tpu.memory_space<vmem>>) attributes {dimension_semantics = [#tpu.dimension_semantics<parallel>], iteration_bounds = array<i64: 1>, scalar_prefetch = 0 : i64, scratch_operands = 0 : i64, tpu.core_type = #tpu.core_type<tc>, window_params = [{transform_indices = @transform_0, window_bounds = array<i64: 8, 32>}, {transform_indices = @transform_1, window_bounds = array<i64: 8, 8>}, {pipeline_mode = #tpu.pipeline_mode<synchronous>, transform_indices = @transform_2, window_bounds = array<i64: 32, 32>}, {pipeline_mode = #tpu.pipeline_mode<synchronous>, transform_indices = @transform_3, window_bounds = array<i64: 1, 32>}, {pipeline_mode = #tpu.pipeline_mode<synchronous>, transform_indices = @transform_4, window_bounds = array<i64: 32, 32>}, {pipeline_mode = #tpu.pipeline_mode<synchronous>, transform_indices = @transform_5, window_bounds = array<i64: 1, 32>}, {pipeline_mode = #tpu.pipeline_mode<synchronous>, transform_indices = @transform_6, window_bounds = array<i64: 32, 16>}, {pipeline_mode = #tpu.pipeline_mode<synchronous>, transform_indices = @transform_7, window_bounds = array<i64: 1, 16>}, {pipeline_mode = #tpu.pipeline_mode<synchronous>, transform_indices = @transform_8, window_bounds = array<i64: 8, 64>}, {pipeline_mode = #tpu.pipeline_mode<synchronous>, transform_indices = @transform_9, window_bounds = array<i64: 1, 64>}, {transform_indices = @transform_10, window_bounds = array<i64: 8, 16>}, {transform_indices = @transform_11, window_bounds = array<i64: 8, 64>}]} {
    %c0 = arith.constant 0 : index
    %c0_0 = arith.constant 0 : index
    %0 = vector.load %arg1[%c0, %c0_0] : memref<8x32xf32, #tpu.memory_space<vmem>>, vector<8x32xf32>
    %c0_1 = arith.constant 0 : index
    %c0_2 = arith.constant 0 : index
    %1 = vector.load %arg3[%c0_1, %c0_2] : memref<32x32xf32, #tpu.memory_space<vmem>>, vector<32x32xf32>
    %cst = arith.constant dense<0.000000e+00> : vector<8x32xf32>
    %2 = tpu.matmul %0, %1, %cst {dimension_numbers = #tpu.dot_dimension_numbers<[1], [0], [0], [1], [0, 0, 1, 1], [], []>} : vector<8x32xf32>, vector<32x32xf32>, vector<8x32xf32> -> vector<8x32xf32>
    %c0_3 = arith.constant 0 : index
    %c0_4 = arith.constant 0 : index
    %3 = vector.load %arg4[%c0_3, %c0_4] : memref<1x32xf32, #tpu.memory_space<vmem>>, vector<1x32xf32>
    %4 = vector.broadcast %3 : vector<1x32xf32> to vector<8x32xf32>
    %5 = arith.addf %2, %4 : vector<8x32xf32>
    %cst_5 = arith.constant 0.000000e+00 : f32
    %6 = vector.broadcast %cst_5 : f32 to vector<8x32xf32>
    %7 = arith.maximumf %5, %6 : vector<8x32xf32>
    %c0_6 = arith.constant 0 : index
    %c0_7 = arith.constant 0 : index
    %8 = vector.load %arg5[%c0_6, %c0_7] : memref<32x32xf32, #tpu.memory_space<vmem>>, vector<32x32xf32>
    %cst_8 = arith.constant dense<0.000000e+00> : vector<8x32xf32>
    %9 = tpu.matmul %7, %8, %cst_8 {dimension_numbers = #tpu.dot_dimension_numbers<[1], [0], [0], [1], [0, 0, 1, 1], [], []>} : vector<8x32xf32>, vector<32x32xf32>, vector<8x32xf32> -> vector<8x32xf32>
    %c0_9 = arith.constant 0 : index
    %c0_10 = arith.constant 0 : index
    %10 = vector.load %arg6[%c0_9, %c0_10] : memref<1x32xf32, #tpu.memory_space<vmem>>, vector<1x32xf32>
    %11 = vector.broadcast %10 : vector<1x32xf32> to vector<8x32xf32>
    %12 = arith.addf %9, %11 : vector<8x32xf32>
    %cst_11 = arith.constant 0.000000e+00 : f32
    %13 = vector.broadcast %cst_11 : f32 to vector<8x32xf32>
    %14 = arith.maximumf %12, %13 : vector<8x32xf32>
    %c0_12 = arith.constant 0 : index
    %c0_13 = arith.constant 0 : index
    %15 = vector.load %arg7[%c0_12, %c0_13] : memref<32x16xf32, #tpu.memory_space<vmem>>, vector<32x16xf32>
    %cst_14 = arith.constant dense<0.000000e+00> : vector<8x16xf32>
    %16 = tpu.matmul %14, %15, %cst_14 {dimension_numbers = #tpu.dot_dimension_numbers<[1], [0], [0], [1], [0, 0, 1, 1], [], []>} : vector<8x32xf32>, vector<32x16xf32>, vector<8x16xf32> -> vector<8x16xf32>
    %c0_15 = arith.constant 0 : index
    %c0_16 = arith.constant 0 : index
    %17 = vector.load %arg8[%c0_15, %c0_16] : memref<1x16xf32, #tpu.memory_space<vmem>>, vector<1x16xf32>
    %18 = vector.broadcast %17 : vector<1x16xf32> to vector<8x16xf32>
    %19 = arith.addf %16, %18 : vector<8x16xf32>
    %20 = vector.extract_strided_slice %19 {offsets = [0, 0], sizes = [8, 8], strides = [1, 1]} : vector<8x16xf32> to vector<8x8xf32>
    %21 = vector.extract_strided_slice %19 {offsets = [0, 8], sizes = [8, 8], strides = [1, 1]} : vector<8x16xf32> to vector<8x8xf32>
    %c0_17 = arith.constant 0 : index
    %c0_18 = arith.constant 0 : index
    %22 = vector.load %arg2[%c0_17, %c0_18] : memref<8x8xf32, #tpu.memory_space<vmem>>, vector<8x8xf32>
    %cst_19 = arith.constant 5.000000e-01 : f32
    %23 = vector.broadcast %cst_19 : f32 to vector<8x8xf32>
    %24 = arith.mulf %23, %21 : vector<8x8xf32>
    %25 = math.exp %24 : vector<8x8xf32>
    %26 = arith.mulf %22, %25 : vector<8x8xf32>
    %27 = arith.addf %26, %20 : vector<8x8xf32>
    %c0_20 = arith.constant 0 : index
    %c0_21 = arith.constant 0 : index
    %28 = vector.load %arg9[%c0_20, %c0_21] : memref<8x64xf32, #tpu.memory_space<vmem>>, vector<8x64xf32>
    %cst_22 = arith.constant dense<0.000000e+00> : vector<8x64xf32>
    %29 = tpu.matmul %27, %28, %cst_22 {dimension_numbers = #tpu.dot_dimension_numbers<[1], [0], [0], [1], [0, 0, 1, 1], [], []>} : vector<8x8xf32>, vector<8x64xf32>, vector<8x64xf32> -> vector<8x64xf32>
    %c0_23 = arith.constant 0 : index
    %c0_24 = arith.constant 0 : index
    %30 = vector.load %arg10[%c0_23, %c0_24] : memref<1x64xf32, #tpu.memory_space<vmem>>, vector<1x64xf32>
    %31 = vector.broadcast %30 : vector<1x64xf32> to vector<8x64xf32>
    %32 = arith.addf %29, %31 : vector<8x64xf32>
    %c0_25 = arith.constant 0 : index
    %c0_26 = arith.constant 0 : index
    %33 = vector.load %arg12[%c0_25, %c0_26] : memref<8x64xf32, #tpu.memory_space<vmem>>, vector<8x64xf32>
    tpu.vector_store %arg12[%c0_25, %c0_26], %32 {strides = array<i32>} : memref<8x64xf32, #tpu.memory_space<vmem>>, vector<8x64xf32>,
    %c0_27 = arith.constant 0 : index
    %c0_28 = arith.constant 0 : index
    %34 = vector.load %arg11[%c0_27, %c0_28] : memref<8x16xf32, #tpu.memory_space<vmem>>, vector<8x16xf32>
    tpu.vector_store %arg11[%c0_27, %c0_28], %19 {strides = array<i32>} : memref<8x16xf32, #tpu.memory_space<vmem>>, vector<8x16xf32>,
    return
  }
  func.func @transform_0(%arg0: i32) -> (i32, i32) {
    %c0_i32 = arith.constant 0 : i32
    %c0_i32_0 = arith.constant 0 : i32
    return %arg0, %c0_i32 : i32, i32
  }
  func.func @transform_1(%arg0: i32) -> (i32, i32) {
    %c0_i32 = arith.constant 0 : i32
    %c0_i32_0 = arith.constant 0 : i32
    return %arg0, %c0_i32 : i32, i32
  }
  func.func @transform_2(%arg0: i32) -> (i32, i32) {
    %c0_i32 = arith.constant 0 : i32
    %c0_i32_0 = arith.constant 0 : i32
    %c0_i32_1 = arith.constant 0 : i32
    return %c0_i32, %c0_i32_0 : i32, i32
  }
  func.func @transform_3(%arg0: i32) -> (i32, i32) {
    %c0_i32 = arith.constant 0 : i32
    %c0_i32_0 = arith.constant 0 : i32
    %c0_i32_1 = arith.constant 0 : i32
    return %c0_i32, %c0_i32_0 : i32, i32
  }
  func.func @transform_4(%arg0: i32) -> (i32, i32) {
    %c0_i32 = arith.constant 0 : i32
    %c0_i32_0 = arith.constant 0 : i32
    %c0_i32_1 = arith.constant 0 : i32
    return %c0_i32, %c0_i32_0 : i32, i32
  }
  func.func @transform_5(%arg0: i32) -> (i32, i32) {
    %c0_i32 = arith.constant 0 : i32
    %c0_i32_0 = arith.constant 0 : i32
    %c0_i32_1 = arith.constant 0 : i32
    return %c0_i32, %c0_i32_0 : i32, i32
  }
  func.func @transform_6(%arg0: i32) -> (i32, i32) {
    %c0_i32 = arith.constant 0 : i32
    %c0_i32_0 = arith.constant 0 : i32
    %c0_i32_1 = arith.constant 0 : i32
    return %c0_i32, %c0_i32_0 : i32, i32
  }
  func.func @transform_7(%arg0: i32) -> (i32, i32) {
    %c0_i32 = arith.constant 0 : i32
    %c0_i32_0 = arith.constant 0 : i32
    %c0_i32_1 = arith.constant 0 : i32
    return %c0_i32, %c0_i32_0 : i32, i32
  }
  func.func @transform_8(%arg0: i32) -> (i32, i32) {
    %c0_i32 = arith.constant 0 : i32
    %c0_i32_0 = arith.constant 0 : i32
    %c0_i32_1 = arith.constant 0 : i32
    return %c0_i32, %c0_i32_0 : i32, i32
  }
  func.func @transform_9(%arg0: i32) -> (i32, i32) {
    %c0_i32 = arith.constant 0 : i32
    %c0_i32_0 = arith.constant 0 : i32
    %c0_i32_1 = arith.constant 0 : i32
    return %c0_i32, %c0_i32_0 : i32, i32
  }
  func.func @transform_10(%arg0: i32) -> (i32, i32) {
    %c0_i32 = arith.constant 0 : i32
    %c0_i32_0 = arith.constant 0 : i32
    return %arg0, %c0_i32 : i32, i32
  }
  func.func @transform_11(%arg0: i32) -> (i32, i32) {
    %c0_i32 = arith.constant 0 : i32
    %c0_i32_0 = arith.constant 0 : i32
    return %arg0, %c0_i32 : i32, i32
  }
}

</mosaic_0001>

<llo_original>
// kernel: tpu_custom_call.1
$region0: #{tpu_custom_call.1}
  #allocation0 [shape = 'u32[]', space=smem, size = 0x4, offset = 0x4, fixed_abs, tag = 'smem constant byte address 0x4 - core index']
  #allocation1 [shape = 'u32[144,128]{1,0:T(1,128)}', space=vmem, size = 0x12000, scoped, tag = 'internal scratch']
  %s0 = inlined_call_operand.vmem [shape: f32[8,32], index: 0, kind: input, shape index: {}]
  %s1 = inlined_call_operand.vmem [shape: f32[8,8], index: 1, kind: input, shape index: {}]
  %s2 = inlined_call_operand.vmem [shape: f32[32,32], index: 2, kind: input, shape index: {}]
  %s3 = inlined_call_operand.vmem [shape: f32[1,32], index: 3, kind: input, shape index: {}]
  %s4 = inlined_call_operand.hbm [shape: f32[32,32], index: 4, kind: input, shape index: {}]
  %s5 = inlined_call_operand.hbm [shape: f32[1,32], index: 5, kind: input, shape index: {}]
  %s6 = inlined_call_operand.vmem [shape: f32[32,16], index: 6, kind: input, shape index: {}]
  %s7 = inlined_call_operand.vmem [shape: f32[1,16], index: 7, kind: input, shape index: {}]
  %s8 = inlined_call_operand.vmem [shape: f32[8,64], index: 8, kind: input, shape index: {}]
  %s9 = inlined_call_operand.vmem [shape: f32[1,64], index: 9, kind: input, shape index: {}]
  %s10 = inlined_call_operand.hbm [shape: f32[8,16], index: 10, kind: output, shape index: {0}]
  %s11 = inlined_call_operand.hbm [shape: f32[8,64], index: 11, kind: output, shape index: {1}]
  %12 = xla_tuple %s10, %s11
  %s13 = sld [smem:[#allocation0]]
  $region66: #{tpu_custom_call.1} parent=0
    _
  %s15 = ssub.s32 1, %s13
  %s16 = scalar_select 0, %s15, %s13
  $region1: #{tpu_custom_call.1} parent=0
    #allocation2 [shape = 'u8[16384]{0}', space=vmem, size = 0x4000, scoped, tag = 'input window, operand 4, single buffered']
    #allocation3 [shape = 's32[1]{0}', space=sflag, size = 0x4, scoped, tag = 'scoped memory for tpu_custom_call.1']
    #allocation4 [shape = 's32[1]{0}', space=sflag, size = 0x4, scoped, tag = 'scoped memory for tpu_custom_call.1']
    #allocation5 [shape = 'u8[512]{0}', space=vmem, size = 0x400, scoped, tag = 'input window, operand 5, single buffered']
    #allocation6 [shape = 's32[1]{0}', space=sflag, size = 0x4, scoped, tag = 'scoped memory for tpu_custom_call.1']
    #allocation7 [shape = 'u8[4096]{0}', space=vmem, size = 0x1000, scoped, tag = 'output window, operand 0, single buffered']
    #allocation8 [shape = 'u8[4096]{0}', space=vmem, size = 0x1000, scoped, tag = 'output window, operand 1, single buffered']
    #allocation9 [shape = 's32[1]{0}', space=sflag, size = 0x4, scoped, tag = 'scoped memory for tpu_custom_call.1']
    %17 = vsyncpa [#allocation3], 0
    %18 = vsyncpa [#allocation6], 0
    %19 = vsyncpa [#allocation4], 0
    %20 = vsyncpa [#allocation9], 0
    // Predicated region
    $region2: #{tpu_custom_call.1} parent=1 // pred_check
      _
    $region3: #{tpu_custom_call.1} parent=1 // pred_check_branch
      %22 = sbr.rel (0) target = $region5
    $region4: #{tpu_custom_call.1} parent=1 // pred_region
      _
    $region5: #{tpu_custom_call.1} parent=1 // pred_fallthru
      _
    // Predicated region
    $region6: #{tpu_custom_call.1} parent=1 // pred_check
      _
    $region7: #{tpu_custom_call.1} parent=1 // pred_check_branch
      %24 = sbr.rel (0) target = $region9
    $region8: #{tpu_custom_call.1} parent=1 // pred_region
      _
    $region9: #{tpu_custom_call.1} parent=1 // pred_fallthru
      _
    // Predicated region
    $region10: #{tpu_custom_call.1} parent=1 // pred_check
      _
    $region11: #{tpu_custom_call.1} parent=1 // pred_check_branch
      %26 = sbr.rel (0) target = $region13
    $region12: #{tpu_custom_call.1} parent=1 // pred_region
      _
    $region13: #{tpu_custom_call.1} parent=1 // pred_fallthru
      _
    // Predicated region
    $region14: #{tpu_custom_call.1} parent=1 // pred_check
      _
    $region15: #{tpu_custom_call.1} parent=1 // pred_check_branch
      %28 = sbr.rel (0) target = $region17
    $region16: #{tpu_custom_call.1} parent=1 // pred_region
      _
    $region17: #{tpu_custom_call.1} parent=1 // pred_fallthru
      _
    // Predicated region
    $region18: #{tpu_custom_call.1} parent=1 // pred_check
      _
    $region19: #{tpu_custom_call.1} parent=1 // pred_check_branch
      %30 = sbr.rel (0) target = $region21
    $region20: #{tpu_custom_call.1} parent=1 // pred_region
      %s32 = ssub.s32 512, 512
      %33 = vsyncadd [#allocation3], %s32
      %s34 = sshll.u32 [#allocation2], 4
      %s35 = int_to_ptr.vmem [resolvable:$true] %s34
      %40 = dma.hbm_to_vmem [thread:$0]  %s4, 512, %s35, [#allocation3], 128, 128, 8
    $region21: #{tpu_custom_call.1} parent=1 // pred_fallthru
      _
    // Predicated region
    $region22: #{tpu_custom_call.1} parent=1 // pred_check
      _
    $region23: #{tpu_custom_call.1} parent=1 // pred_check_branch
      %42 = sbr.rel (0) target = $region25
    $region24: #{tpu_custom_call.1} parent=1 // pred_region
      %s44 = ssub.s32 16, 16
      %45 = vsyncadd [#allocation6], %s44
      %s47 = sshll.u32 [#allocation5], 4
      %s48 = int_to_ptr.vmem [resolvable:$true] %s47
      %50 = dma.hbm_to_vmem [thread:$0]  %s5, 16, %s48, [#allocation6]
    $region25: #{tpu_custom_call.1} parent=1 // pred_fallthru
      _
    // Predicated region
    $region26: #{tpu_custom_call.1} parent=1 // pred_check
      _
    $region27: #{tpu_custom_call.1} parent=1 // pred_check_branch
      %52 = sbr.rel (0) target = $region29
    $region28: #{tpu_custom_call.1} parent=1 // pred_region
      _
    $region29: #{tpu_custom_call.1} parent=1 // pred_fallthru
      _
    // Predicated region
    $region30: #{tpu_custom_call.1} parent=1 // pred_check
      _
    $region31: #{tpu_custom_call.1} parent=1 // pred_check_branch
      %54 = sbr.rel (0) target = $region33
    $region32: #{tpu_custom_call.1} parent=1 // pred_region
      _
    $region33: #{tpu_custom_call.1} parent=1 // pred_fallthru
      _
    // Predicated region
    $region34: #{tpu_custom_call.1} parent=1 // pred_check
      _
    $region35: #{tpu_custom_call.1} parent=1 // pred_check_branch
      %56 = sbr.rel (0) target = $region37
    $region36: #{tpu_custom_call.1} parent=1 // pred_region
      _
    $region37: #{tpu_custom_call.1} parent=1 // pred_fallthru
      _
    // Predicated region
    $region38: #{tpu_custom_call.1} parent=1 // pred_check
      _
    $region39: #{tpu_custom_call.1} parent=1 // pred_check_branch
      %58 = sbr.rel (0) target = $region41
    $region40: #{tpu_custom_call.1} parent=1 // pred_region
      _
    $region41: #{tpu_custom_call.1} parent=1 // pred_fallthru
      _
    // Predicated region
    $region42: #{tpu_custom_call.1} parent=1 // pred_check
      _
    $region43: #{tpu_custom_call.1} parent=1 // pred_check_branch
      %60 = sbr.rel (0) target = $region45
    $region44: #{tpu_custom_call.1} parent=1 // pred_region
      %61 = dma.done [#allocation3], 512
    $region45: #{tpu_custom_call.1} parent=1 // pred_fallthru
      _
    // Predicated region
    $region46: #{tpu_custom_call.1} parent=1 // pred_check
      _
    $region47: #{tpu_custom_call.1} parent=1 // pred_check_branch
      %63 = sbr.rel (0) target = $region49
    $region48: #{tpu_custom_call.1} parent=1 // pred_region
      %64 = dma.done [#allocation6], 16
    $region49: #{tpu_custom_call.1} parent=1 // pred_fallthru
      _
    %v65 = vld [vmem:[%s0] sm:$0xff]
    %v66 = vld [vmem:[%s2] sm:$0xff]
    %v67 = vld [vmem:[%s2 + $0x8] sm:$0xff]
    %v68 = vld [vmem:[%s2 + $0x10] sm:$0xff]
    %v69 = vld [vmem:[%s2 + $0x18] sm:$0xff]
    %v70 = vld [vmem:[%s3] sm:$0x1]
    %v72 = vlaneseq
    %v73 = vshrl.u32 %v72, 7
    %v74 = vsub.s32 0, %v73
    %v75 = vrot.slane %v70, %v74
    %vm77 = vcmask 261120
    %v79 = vsel %vm77, %v65, 0
    %81 = vmatprep.subr.mxu0 0.0
    %82 = vmatpush1.msra.mxu0 0.0
    %83 = vmatprep.subr.mxu0 0.0
    %84 = vmatpush1.msra.mxu0 0.0
    %85 = vmatprep.subr.mxu0 0.0
    %86 = vmatpush1.msra.mxu0 0.0
    %87 = vmatprep.subr.mxu0 0.0
    %88 = vmatpush1.msra.mxu0 0.0
    %89 = vmatprep.subr.mxu0 0.0
    %90 = vmatpush1.msra.mxu0 0.0
    %91 = vmatprep.subr.mxu0 0.0
    %92 = vmatpush1.msra.mxu0 0.0
    %93 = vmatprep.subr.mxu0 0.0
    %94 = vmatpush1.msra.mxu0 0.0
    %95 = vmatprep.subr.mxu0 0.0
    %96 = vmatpush1.msra.mxu0 0.0
    %97 = vmatprep.subr.mxu0 0.0
    %98 = vmatpush1.msra.mxu0 0.0
    %99 = vmatprep.subr.mxu0 0.0
    %100 = vmatpush1.msra.mxu0 0.0
    %101 = vmatprep.subr.mxu0 0.0
    %102 = vmatpush1.msra.mxu0 0.0
    %103 = vmatprep.subr.mxu0 0.0
    %104 = vmatpush1.msra.mxu0 0.0
    %105 = vmatprep.subr.mxu0 0.0
    %106 = vmatpush1.msra.mxu0 %v69
    %107 = vmatprep.subr.mxu0 0.0
    %108 = vmatpush1.msra.mxu0 %v68
    %109 = vmatprep.subr.mxu0 0.0
    %110 = vmatpush1.msra.mxu0 %v67
    %111 = vmatprep.subr.mxu0 0.0
    %112 = vmatpush1.msra.mxu0 %v66
    %113 = vmatprep.subr.mxu0 0.0
    %114 = vmatpush2.msra.mxu0 0.0
    %115 = vmatprep.subr.mxu0 0.0
    %116 = vmatpush2.msra.mxu0 0.0
    %117 = vmatprep.subr.mxu0 0.0
    %118 = vmatpush2.msra.mxu0 0.0
    %119 = vmatprep.subr.mxu0 0.0
    %120 = vmatpush2.msra.mxu0 0.0
    %121 = vmatprep.subr.mxu0 0.0
    %122 = vmatpush2.msra.mxu0 0.0
    %123 = vmatprep.subr.mxu0 0.0
    %124 = vmatpush2.msra.mxu0 0.0
    %125 = vmatprep.subr.mxu0 0.0
    %126 = vmatpush2.msra.mxu0 0.0
    %127 = vmatprep.subr.mxu0 0.0
    %128 = vmatpush2.msra.mxu0 0.0
    %129 = vmatprep.subr.mxu0 0.0
    %130 = vmatpush2.msra.mxu0 0.0
    %131 = vmatprep.subr.mxu0 0.0
    %132 = vmatpush2.msra.mxu0 0.0
    %133 = vmatprep.subr.mxu0 0.0
    %134 = vmatpush2.msra.mxu0 0.0
    %135 = vmatprep.subr.mxu0 0.0
    %136 = vmatpush2.msra.mxu0 0.0
    %137 = vmatprep.subr.mxu0 0.0
    %138 = vmatpush2.msra.mxu0 0.0
    %139 = vmatprep.subr.mxu0 0.0
    %140 = vmatpush2.msra.mxu0 0.0
    %141 = vmatprep.subr.mxu0 0.0
    %142 = vmatpush2.msra.mxu0 0.0
    %143 = vmatprep.subr.mxu0 0.0
    %144 = vmatpush2.msra.mxu0 0.0
    %145 = vmatprep.mubr.f32.mxu0 0.0
    %146 = vmatmul.mubr.f32.gmra.mxu0 %v79
    %v147 = vpop.f32.mrf.mxu0
    %v148 = vadd.f32 %v75, %v147
    %v149 = vpop.f32.mrf.mxu0
    %150 = vdwg.mxu0
    %v151 = vmax.f32 %v148, 0.0
    %v152 = vld [vmem:[#allocation2] sm:$0xff]
    %v153 = vld [vmem:[#allocation2 + $0x8] sm:$0xff]
    %v154 = vld [vmem:[#allocation2 + $0x10] sm:$0xff]
    %v155 = vld [vmem:[#allocation2 + $0x18] sm:$0xff]
    %v156 = vld [vmem:[#allocation5] sm:$0x1]
    %v158 = vlaneseq
    %v159 = vshrl.u32 %v158, 7
    %v160 = vsub.s32 0, %v159
    %v161 = vrot.slane %v156, %v160
    %v164 = vsel %vm77, %v151, 0
    %166 = vmatprep.subr.mxu0 0.0
    %167 = vmatpush1.msra.mxu0 0.0
    %168 = vmatprep.subr.mxu0 0.0
    %169 = vmatpush1.msra.mxu0 0.0
    %170 = vmatprep.subr.mxu0 0.0
    %171 = vmatpush1.msra.mxu0 0.0
    %172 = vmatprep.subr.mxu0 0.0
    %173 = vmatpush1.msra.mxu0 0.0
    %174 = vmatprep.subr.mxu0 0.0
    %175 = vmatpush1.msra.mxu0 0.0
    %176 = vmatprep.subr.mxu0 0.0
    %177 = vmatpush1.msra.mxu0 0.0
    %178 = vmatprep.subr.mxu0 0.0
    %179 = vmatpush1.msra.mxu0 0.0
    %180 = vmatprep.subr.mxu0 0.0
    %181 = vmatpush1.msra.mxu0 0.0
    %182 = vmatprep.subr.mxu0 0.0
    %183 = vmatpush1.msra.mxu0 0.0
    %184 = vmatprep.subr.mxu0 0.0
    %185 = vmatpush1.msra.mxu0 0.0
    %186 = vmatprep.subr.mxu0 0.0
    %187 = vmatpush1.msra.mxu0 0.0
    %188 = vmatprep.subr.mxu0 0.0
    %189 = vmatpush1.msra.mxu0 0.0
    %190 = vmatprep.subr.mxu0 0.0
    %191 = vmatpush1.msra.mxu0 %v155
    %192 = vmatprep.subr.mxu0 0.0
    %193 = vmatpush1.msra.mxu0 %v154
    %194 = vmatprep.subr.mxu0 0.0
    %195 = vmatpush1.msra.mxu0 %v153
    %196 = vmatprep.subr.mxu0 0.0
    %197 = vmatpush1.msra.mxu0 %v152
    %198 = vmatprep.subr.mxu0 0.0
    %199 = vmatpush2.msra.mxu0 0.0
    %200 = vmatprep.subr.mxu0 0.0
    %201 = vmatpush2.msra.mxu0 0.0
    %202 = vmatprep.subr.mxu0 0.0
    %203 = vmatpush2.msra.mxu0 0.0
    %204 = vmatprep.subr.mxu0 0.0
    %205 = vmatpush2.msra.mxu0 0.0
    %206 = vmatprep.subr.mxu0 0.0
    %207 = vmatpush2.msra.mxu0 0.0
    %208 = vmatprep.subr.mxu0 0.0
    %209 = vmatpush2.msra.mxu0 0.0
    %210 = vmatprep.subr.mxu0 0.0
    %211 = vmatpush2.msra.mxu0 0.0
    %212 = vmatprep.subr.mxu0 0.0
    %213 = vmatpush2.msra.mxu0 0.0
    %214 = vmatprep.subr.mxu0 0.0
    %215 = vmatpush2.msra.mxu0 0.0
    %216 = vmatprep.subr.mxu0 0.0
    %217 = vmatpush2.msra.mxu0 0.0
    %218 = vmatprep.subr.mxu0 0.0
    %219 = vmatpush2.msra.mxu0 0.0
    %220 = vmatprep.subr.mxu0 0.0
    %221 = vmatpush2.msra.mxu0 0.0
    %222 = vmatprep.subr.mxu0 0.0
    %223 = vmatpush2.msra.mxu0 0.0
    %224 = vmatprep.subr.mxu0 0.0
    %225 = vmatpush2.msra.mxu0 0.0
    %226 = vmatprep.subr.mxu0 0.0
    %227 = vmatpush2.msra.mxu0 0.0
    %228 = vmatprep.subr.mxu0 0.0
    %229 = vmatpush2.msra.mxu0 0.0
    %230 = vmatprep.mubr.f32.mxu0 0.0
    %231 = vmatmul.mubr.f32.gmra.mxu0 %v164
    %v232 = vpop.f32.mrf.mxu0
    %v233 = vadd.f32 %v161, %v232
    %v234 = vpop.f32.mrf.mxu0
    %235 = vdwg.mxu0
    %v236 = vmax.f32 %v233, 0.0
    %v237 = vld [vmem:[%s6] sm:$0xff]
    %v238 = vld [vmem:[%s6 + $0x8] sm:$0xff]
    %v239 = vld [vmem:[%s6 + $0x10] sm:$0xff]
    %v240 = vld [vmem:[%s6 + $0x18] sm:$0xff]
    %v241 = vld [vmem:[%s7] sm:$0x1]
    %v243 = vlaneseq
    %v244 = vshrl.u32 %v243, 7
    %v245 = vsub.s32 0, %v244
    %v246 = vrot.slane %v241, %v245
    %v249 = vsel %vm77, %v236, 0
    %251 = vmatprep.subr.mxu0 0.0
    %252 = vmatpush1.msra.mxu0 0.0
    %253 = vmatprep.subr.mxu0 0.0
    %254 = vmatpush1.msra.mxu0 0.0
    %255 = vmatprep.subr.mxu0 0.0
    %256 = vmatpush1.msra.mxu0 0.0
    %257 = vmatprep.subr.mxu0 0.0
    %258 = vmatpush1.msra.mxu0 0.0
    %259 = vmatprep.subr.mxu0 0.0
    %260 = vmatpush1.msra.mxu0 0.0
    %261 = vmatprep.subr.mxu0 0.0
    %262 = vmatpush1.msra.mxu0 0.0
    %263 = vmatprep.subr.mxu0 0.0
    %264 = vmatpush1.msra.mxu0 0.0
    %265 = vmatprep.subr.mxu0 0.0
    %266 = vmatpush1.msra.mxu0 0.0
    %267 = vmatprep.subr.mxu0 0.0
    %268 = vmatpush1.msra.mxu0 0.0
    %269 = vmatprep.subr.mxu0 0.0
    %270 = vmatpush1.msra.mxu0 0.0
    %271 = vmatprep.subr.mxu0 0.0
    %272 = vmatpush1.msra.mxu0 0.0
    %273 = vmatprep.subr.mxu0 0.0
    %274 = vmatpush1.msra.mxu0 0.0
    %275 = vmatprep.subr.mxu0 0.0
    %276 = vmatpush1.msra.mxu0 %v240
    %277 = vmatprep.subr.mxu0 0.0
    %278 = vmatpush1.msra.mxu0 %v239
    %279 = vmatprep.subr.mxu0 0.0
    %280 = vmatpush1.msra.mxu0 %v238
    %281 = vmatprep.subr.mxu0 0.0
    %282 = vmatpush1.msra.mxu0 %v237
    %283 = vmatprep.subr.mxu0 0.0
    %284 = vmatpush2.msra.mxu0 0.0
    %285 = vmatprep.subr.mxu0 0.0
    %286 = vmatpush2.msra.mxu0 0.0
    %287 = vmatprep.subr.mxu0 0.0
    %288 = vmatpush2.msra.mxu0 0.0
    %289 = vmatprep.subr.mxu0 0.0
    %290 = vmatpush2.msra.mxu0 0.0
    %291 = vmatprep.subr.mxu0 0.0
    %292 = vmatpush2.msra.mxu0 0.0
    %293 = vmatprep.subr.mxu0 0.0
    %294 = vmatpush2.msra.mxu0 0.0
    %295 = vmatprep.subr.mxu0 0.0
    %296 = vmatpush2.msra.mxu0 0.0
    %297 = vmatprep.subr.mxu0 0.0
    %298 = vmatpush2.msra.mxu0 0.0
    %299 = vmatprep.subr.mxu0 0.0
    %300 = vmatpush2.msra.mxu0 0.0
    %301 = vmatprep.subr.mxu0 0.0
    %302 = vmatpush2.msra.mxu0 0.0
    %303 = vmatprep.subr.mxu0 0.0
    %304 = vmatpush2.msra.mxu0 0.0
    %305 = vmatprep.subr.mxu0 0.0
    %306 = vmatpush2.msra.mxu0 0.0
    %307 = vmatprep.subr.mxu0 0.0
    %308 = vmatpush2.msra.mxu0 0.0
    %309 = vmatprep.subr.mxu0 0.0
    %310 = vmatpush2.msra.mxu0 0.0
    %311 = vmatprep.subr.mxu0 0.0
    %312 = vmatpush2.msra.mxu0 0.0
    %313 = vmatprep.subr.mxu0 0.0
    %314 = vmatpush2.msra.mxu0 0.0
    %315 = vmatprep.mubr.f32.mxu0 0.0
    %316 = vmatmul.mubr.f32.gmra.mxu0 %v249
    %v317 = vpop.f32.mrf.mxu0
    %v318 = vadd.f32 %v246, %v317
    %v319 = vpop.f32.mrf.mxu0
    %320 = vdwg.mxu0
    %v321 = vld [vmem:[%s1] sm:$0xff]
    %v322 = vmul.f32 %v318, 0.5
    %v323 = vmul.f32 %v322, 1.442695
    %v324 = vpow.pop %v323
    %326 = vrot.lane.b32.xlu0 %v324, 120
    %v327 = vpop.permute.xlu0 %326
    %v329 = vmul.f32 %v321, %v327
    %v330 = vadd.f32 %v329, %v318
    %v331 = vld [vmem:[%s8] sm:$0xff]
    %v332 = vld [vmem:[%s9] sm:$0x1]
    %v334 = vlaneseq
    %v335 = vshrl.u32 %v334, 7
    %v336 = vsub.s32 0, %v335
    %v337 = vrot.slane %v332, %v336
    %vm339 = vcmask 64512
    %v341 = vsel %vm339, %v330, 0
    %343 = vmatprep.subr.mxu0 0.0
    %344 = vmatpush1.msra.mxu0 0.0
    %345 = vmatprep.subr.mxu0 0.0
    %346 = vmatpush1.msra.mxu0 0.0
    %347 = vmatprep.subr.mxu0 0.0
    %348 = vmatpush1.msra.mxu0 0.0
    %349 = vmatprep.subr.mxu0 0.0
    %350 = vmatpush1.msra.mxu0 0.0
    %351 = vmatprep.subr.mxu0 0.0
    %352 = vmatpush1.msra.mxu0 0.0
    %353 = vmatprep.subr.mxu0 0.0
    %354 = vmatpush1.msra.mxu0 0.0
    %355 = vmatprep.subr.mxu0 0.0
    %356 = vmatpush1.msra.mxu0 0.0
    %357 = vmatprep.subr.mxu0 0.0
    %358 = vmatpush1.msra.mxu0 0.0
    %359 = vmatprep.subr.mxu0 0.0
    %360 = vmatpush1.msra.mxu0 0.0
    %361 = vmatprep.subr.mxu0 0.0
    %362 = vmatpush1.msra.mxu0 0.0
    %363 = vmatprep.subr.mxu0 0.0
    %364 = vmatpush1.msra.mxu0 0.0
    %365 = vmatprep.subr.mxu0 0.0
    %366 = vmatpush1.msra.mxu0 0.0
    %367 = vmatprep.subr.mxu0 0.0
    %368 = vmatpush1.msra.mxu0 0.0
    %369 = vmatprep.subr.mxu0 0.0
    %370 = vmatpush1.msra.mxu0 0.0
    %371 = vmatprep.subr.mxu0 0.0
    %372 = vmatpush1.msra.mxu0 0.0
    %373 = vmatprep.subr.mxu0 0.0
    %374 = vmatpush1.msra.mxu0 %v331
    %375 = vmatprep.subr.mxu0 0.0
    %376 = vmatpush2.msra.mxu0 0.0
    %377 = vmatprep.subr.mxu0 0.0
    %378 = vmatpush2.msra.mxu0 0.0
    %379 = vmatprep.subr.mxu0 0.0
    %380 = vmatpush2.msra.mxu0 0.0
    %381 = vmatprep.subr.mxu0 0.0
    %382 = vmatpush2.msra.mxu0 0.0
    %383 = vmatprep.subr.mxu0 0.0
    %384 = vmatpush2.msra.mxu0 0.0
    %385 = vmatprep.subr.mxu0 0.0
    %386 = vmatpush2.msra.mxu0 0.0
    %387 = vmatprep.subr.mxu0 0.0
    %388 = vmatpush2.msra.mxu0 0.0
    %389 = vmatprep.subr.mxu0 0.0
    %390 = vmatpush2.msra.mxu0 0.0
    %391 = vmatprep.subr.mxu0 0.0
    %392 = vmatpush2.msra.mxu0 0.0
    %393 = vmatprep.subr.mxu0 0.0
    %394 = vmatpush2.msra.mxu0 0.0
    %395 = vmatprep.subr.mxu0 0.0
    %396 = vmatpush2.msra.mxu0 0.0
    %397 = vmatprep.subr.mxu0 0.0
    %398 = vmatpush2.msra.mxu0 0.0
    %399 = vmatprep.subr.mxu0 0.0
    %400 = vmatpush2.msra.mxu0 0.0
    %401 = vmatprep.subr.mxu0 0.0
    %402 = vmatpush2.msra.mxu0 0.0
    %403 = vmatprep.subr.mxu0 0.0
    %404 = vmatpush2.msra.mxu0 0.0
    %405 = vmatprep.subr.mxu0 0.0
    %406 = vmatpush2.msra.mxu0 0.0
    %407 = vmatprep.mubr.f32.mxu0 0.0
    %408 = vmatmul.mubr.f32.gmra.mxu0 %v341
    %v409 = vpop.f32.mrf.mxu0
    %v410 = vadd.f32 %v337, %v409
    %v411 = vpop.f32.mrf.mxu0
    %412 = vdwg.mxu0
    %vm413 = vcmask 523264
    %414 = vst.msk [vmem:[#allocation8] sm:$0xff] %vm413, %v410
    %vm415 = vcmask 130048
    %416 = vst.msk [vmem:[#allocation7] sm:$0xff] %vm415, %v318
    // Predicated region
    $region50: #{tpu_custom_call.1} parent=1 // pred_check
      _
    $region51: #{tpu_custom_call.1} parent=1 // pred_check_branch
      %418 = sbr.rel (0) target = $region53
    $region52: #{tpu_custom_call.1} parent=1 // pred_region
      %s420 = ssub.s32 128, 128
      %421 = vsyncadd [#allocation4], %s420
      %s423 = sshll.u32 [#allocation7], 4
      %s424 = int_to_ptr.vmem [resolvable:$true] %s423
      %426 = dma.vmem_to_hbm [thread:$0]  %s424, 128, %s10, [#allocation4]
    $region53: #{tpu_custom_call.1} parent=1 // pred_fallthru
      _
    // Predicated region
    $region54: #{tpu_custom_call.1} parent=1 // pred_check
      _
    $region55: #{tpu_custom_call.1} parent=1 // pred_check_branch
      %428 = sbr.rel (0) target = $region57
    $region56: #{tpu_custom_call.1} parent=1 // pred_region
      %s430 = ssub.s32 128, 128
      %431 = vsyncadd [#allocation9], %s430
      %s433 = sshll.u32 [#allocation8], 4
      %s434 = int_to_ptr.vmem [resolvable:$true] %s433
      %436 = dma.vmem_to_hbm [thread:$0]  %s434, 128, %s11, [#allocation9]
    $region57: #{tpu_custom_call.1} parent=1 // pred_fallthru
      _
    // Predicated region
    $region58: #{tpu_custom_call.1} parent=1 // pred_check
      _
    $region59: #{tpu_custom_call.1} parent=1 // pred_check_branch
      %438 = sbr.rel (0) target = $region61
    $region60: #{tpu_custom_call.1} parent=1 // pred_region
      %439 = dma.done [#allocation4], 128
    $region61: #{tpu_custom_call.1} parent=1 // pred_fallthru
      _
    // Predicated region
    $region62: #{tpu_custom_call.1} parent=1 // pred_check
      _
    $region63: #{tpu_custom_call.1} parent=1 // pred_check_branch
      %441 = sbr.rel (0) target = $region65
    $region64: #{tpu_custom_call.1} parent=1 // pred_region
      %442 = dma.done [#allocation9], 128
    $region65: #{tpu_custom_call.1} parent=1 // pred_fallthru
      _
    %443 = vsyncpa [#allocation3], 1
    %444 = vsyncpa [#allocation6], 1
    %445 = vsyncpa [#allocation4], 1
    %446 = vsyncpa [#allocation9], 1

</llo_original>
